<compile_context>
chip_gen: v7x
topology: tpu7x:2x2x1
jax: 0.10.0
libtpu: 0.0.40
codegen_flags: <defaults>
</compile_context>

<pallas_src>
import functools

import jax
import jax.numpy as jnp
from jax.experimental import pallas as pl
from jax.experimental.pallas import tpu as pltpu

_LANE = 128
# Row tile for the destination-node grid axis; it is also the row padding unit
# so each layer's padded N_out equals the next layer's padded N_in.  Production
# graphs would sweep 256-512 here.
_ROW_TILE = 128


def _round_up(x, m):
    return (x + m - 1) // m * m


def _pad2d(x, rows, cols):
    return jnp.pad(x, ((0, rows - x.shape[0]), (0, cols - x.shape[1])))


def _vmem_limit(nbytes):
    return int(min(48 << 20, max(8 << 20, int(1.5 * nbytes))))


# ----------------------------------------------------------------------------
# Kernels
# ----------------------------------------------------------------------------
def _fc_init_kernel(x_ref, w_ref, b_ref, o_ref):
    """h = relu(x @ W + b) for one row tile of input (PI) nodes."""
    h = jnp.dot(x_ref[...].astype(jnp.bfloat16), w_ref[...],
                preferred_element_type=jnp.float32)
    o_ref[...] = jnp.maximum(h + b_ref[...], 0.0).astype(o_ref.dtype)


def _sage_kernel(a_ref, rdeg_ref, h_ref, hdst_ref, ws_ref, wn_ref, b_ref,
                 o_ref, *, apply_relu):
    """One SAGEConv layer (mean aggregate, 'sum' combine, self included) for
    one tile of destination rows.  bf16 MXU operands, f32 accumulation."""
    # mean aggregation: (T, N_in_p) bf16 @ (N_in_p, H_p) bf16 -> f32
    neigh = jnp.dot(a_ref[...], h_ref[...], preferred_element_type=jnp.float32)
    neigh = neigh * rdeg_ref[...]                 # precomputed 1/deg (f32)
    # 'sum' combine as two accumulated dots (no (N, 2H) concat buffer).
    out = jnp.dot(hdst_ref[...], ws_ref[...], preferred_element_type=jnp.float32)
    out = out + jnp.dot(neigh.astype(jnp.bfloat16), wn_ref[...],
                        preferred_element_type=jnp.float32)
    out = out + b_ref[...]
    if apply_relu:
        out = jnp.maximum(out, 0.0)
    o_ref[...] = out.astype(o_ref.dtype)          # lane-dense store


# ----------------------------------------------------------------------------
# Wrapper
# ----------------------------------------------------------------------------
def graphsage_forward(blocks, features, params):
    """blocks[i]: dense 0/1 adjacency (N_out_i, N_in_i); per the DGL MFG
    convention the dst nodes of a block are the first N_out_i input nodes and
    N_in_{i+1} == N_out_i.  Returns (N_PO, out_dim), squeezed if out_dim==1."""
    n_conv = len(blocks)
    in_dim = features.shape[1]
    hidden_dim = params["fc_init_w"].shape[1]
    out_dim = params["layers"][-1][0].shape[1]

    # DGL message-flow-graph chain convention (padded garbage rows rely on it).
    assert blocks[0].shape[1] == features.shape[0]
    for i in range(n_conv):
        assert blocks[i].shape[0] <= blocks[i].shape[1], \
            "dst nodes must be a prefix of the block's input nodes"
        if i > 0:
            assert blocks[i].shape[1] == blocks[i - 1].shape[0], \
                "N_in of block i must equal N_out of block i-1 (DGL MFG chain)"

    T = _ROW_TILE
    bf16 = jnp.bfloat16
    f_pad = _round_up(in_dim, _LANE)
    h_pad = _round_up(hidden_dim, _LANE)
    o_pad = _round_up(out_dim, _LANE)
    # Rectangular per-block padding (no square max-N padding).
    rows_in = [_round_up(blk.shape[1], T) for blk in blocks]
    rows_out = [_round_up(blk.shape[0], T) for blk in blocks]

    # ---- fc_init + relu -----------------------------------------------------
    x_p = _pad2d(features.astype(jnp.float32), rows_in[0], f_pad)
    w0_p = _pad2d(params["fc_init_w"], f_pad, h_pad).astype(bf16)
    b0_p = _pad2d(params["fc_init_b"].reshape(1, -1), 1, h_pad).astype(jnp.float32)

    fc_bytes = x_p.size * 4 + w0_p.size * 2 + b0_p.size * 4 + rows_in[0] * h_pad * 2
    h = pl.pallas_call(
        _fc_init_kernel,
        out_shape=jax.ShapeDtypeStruct((rows_in[0], h_pad), bf16),
        grid=(rows_in[0] // T,),
        in_specs=[
            pl.BlockSpec((T, f_pad), lambda t: (t, 0)),
            pl.BlockSpec((f_pad, h_pad), lambda t: (0, 0)),
            pl.BlockSpec((1, h_pad), lambda t: (0, 0)),
        ],
        out_specs=pl.BlockSpec((T, h_pad), lambda t: (t, 0)),
        compiler_params=pltpu.CompilerParams(
            dimension_semantics=("parallel",),
            vmem_limit_bytes=_vmem_limit(
                2 * (T * f_pad * 4 + T * h_pad * 2)
                + 2 * (w0_p.size * 2 + b0_p.size * 4)),
        ),
        cost_estimate=pl.CostEstimate(
            flops=2 * rows_in[0] * f_pad * h_pad,
            transcendentals=0,
            bytes_accessed=fc_bytes),
    )(x_p, w0_p, b0_p)

    # ---- SAGEConv layers ------------------------------------------------------
    for i, adj in enumerate(blocks):
        last = (i == n_conv - 1)
        w_self, w_neigh, b = params["layers"][i]
        d_pad = o_pad if last else h_pad
        r_out, c_in = rows_out[i], rows_in[i]

        # dropout between layers -> identity (eval mode).
        adj_p = _pad2d(adj, r_out, c_in).astype(bf16)        # 0/1 exact in bf16
        deg = jnp.sum(adj.astype(jnp.float32), axis=1, keepdims=True)
        rdeg_p = _pad2d(1.0 / jnp.maximum(deg, 1.0), r_out, 1)
        ws_p = _pad2d(w_self, h_pad, d_pad).astype(bf16)
        wn_p = _pad2d(w_neigh, h_pad, d_pad).astype(bf16)
        b_p = _pad2d(b.reshape(1, -1), 1, d_pad).astype(jnp.float32)

        out_dtype = jnp.float32 if last else bf16
        out_bytes = 4 if last else 2
        tile_bytes = (T * c_in * 2 + T * 4 + T * h_pad * 2 + T * d_pad * out_bytes)
        resident_bytes = c_in * h_pad * 2 + 2 * h_pad * d_pad * 2 + d_pad * 4
        layer_bytes = (adj_p.size * 2 + rdeg_p.size * 4 + h.size * 2 * 2
                       + ws_p.size * 2 + wn_p.size * 2 + b_p.size * 4
                       + r_out * d_pad * out_bytes)
        flops = 2 * r_out * c_in * h_pad + 4 * r_out * h_pad * d_pad

        h = pl.pallas_call(
            functools.partial(_sage_kernel, apply_relu=not last),
            out_shape=jax.ShapeDtypeStruct((r_out, d_pad), out_dtype),
            grid=(r_out // T,),
            in_specs=[
                pl.BlockSpec((T, c_in), lambda t: (t, 0)),      # adjacency stripe
                pl.BlockSpec((T, 1), lambda t: (t, 0)),         # 1/deg stripe
                pl.BlockSpec((c_in, h_pad), lambda t: (0, 0)),  # h (all input nodes)
                pl.BlockSpec((T, h_pad), lambda t: (t, 0)),     # h_dst stripe
                pl.BlockSpec((h_pad, d_pad), lambda t: (0, 0)), # W_self
                pl.BlockSpec((h_pad, d_pad), lambda t: (0, 0)), # W_neigh
                pl.BlockSpec((1, d_pad), lambda t: (0, 0)),     # bias
            ],
            out_specs=pl.BlockSpec((T, d_pad), lambda t: (t, 0)),
            compiler_params=pltpu.CompilerParams(
                dimension_semantics=("parallel",),
                vmem_limit_bytes=_vmem_limit(2 * (tile_bytes + resident_bytes)),
            ),
            cost_estimate=pl.CostEstimate(
                flops=flops, transcendentals=0, bytes_accessed=layer_bytes),
        )(adj_p, rdeg_p, h, h, ws_p, wn_p, b_p)

    out = h[:blocks[-1].shape[0], :out_dim]
    if out.shape[1] == 1:                        # mirror torch .squeeze(1)
        out = jnp.squeeze(out, axis=1)
    return out


# ----------------------------------------------------------------------------
# Pure-JAX references (f32 exact math, and bf16 mixed-precision mirror)
# ----------------------------------------------------------------------------
def graphsage_reference(blocks, features, params, mixed=False):
    cast = (lambda x: x.astype(jnp.bfloat16)) if mixed else (lambda x: x)
    f32 = jnp.float32
    h = jnp.dot(cast(features), cast(params["fc_init_w"]),
                preferred_element_type=f32) + params["fc_init_b"][None, :].astype(f32)
    h = jnp.maximum(h, 0.0)
    n_conv = len(blocks)
    for i, adj in enumerate(blocks):
        w_self, w_neigh, b = params["layers"][i]
        n_out = adj.shape[0]
        deg = jnp.sum(adj, axis=1, keepdims=True)
        rdeg = 1.0 / jnp.maximum(deg, 1.0)
        h_c = cast(h)
        neigh = jnp.dot(cast(adj), h_c, preferred_element_type=f32) * rdeg
        h = (jnp.dot(h_c[:n_out], cast(w_self), preferred_element_type=f32)
             + jnp.dot(cast(neigh), cast(w_neigh), preferred_element_type=f32)
             + b[None, :].astype(f32))
        if i != n_conv - 1:
            h = jnp.maximum(h, 0.0)
    if h.shape[1] == 1:
        h = jnp.squeeze(h, axis=1)
    return h


# ----------------------------------------------------------------------------
# Main
# ----------------------------------------------------------------------------
if __name__ == "__main__":
    in_dim = 16
    hidden_dim = 32
    out_dim = 1
    n_layers = 2                      # module builds n_layers + 1 SAGEConv layers
    node_counts = [16, 12, 8, 4]      # PIs -> ... -> POs (len == n_layers + 2)

    key = jax.random.PRNGKey(0)
    keys = jax.random.split(key, 3 + 4 * (n_layers + 1))
    k_feat, k_w0, k_b0 = keys[0], keys[1], keys[2]
    k_layers = keys[3:]

    features = jax.random.normal(k_feat, (node_counts[0], in_dim), jnp.float32)

    params = {
        "fc_init_w": 0.2 * jax.random.normal(
            k_w0, (in_dim, hidden_dim), jnp.float32),
        "fc_init_b": 0.2 * jax.random.normal(k_b0, (hidden_dim,), jnp.float32),
        "layers": [],
    }

    blocks = []
    for i in range(n_layers + 1):
        d_out = hidden_dim if i != n_layers else out_dim
        ka, kw1, kw2, kb = k_layers[4 * i:4 * i + 4]
        n_in, n_out = node_counts[i], node_counts[i + 1]
        adj = jax.random.bernoulli(ka, 0.5, (n_out, n_in)).astype(jnp.float32)
        params["layers"].append((
            0.2 * jax.random.normal(kw1, (hidden_dim, d_out), jnp.float32),
            0.2 * jax.random.normal(kw2, (hidden_dim, d_out), jnp.float32),
            0.2 * jax.random.normal(kb, (d_out,), jnp.float32),
        ))
        blocks.append(adj)

    out = graphsage_forward(blocks, features, params)
    out = jax.block_until_ready(out)
    assert out.shape == (node_counts[-1],), out.shape

    ref_mixed = graphsage_reference(blocks, features, params, mixed=True)
    ref_f32 = graphsage_reference(blocks, features, params, mixed=False)
    err_mixed = float(jnp.max(jnp.abs(out - ref_mixed)))
    err_f32 = float(jnp.max(jnp.abs(out - ref_f32)))
    # The kernel must tightly match a bit-equivalent bf16/f32 mixed-precision
    # reference; the pure-f32 reference bounds accumulated bf16 rounding.
    assert err_mixed < 1e-3, f"mixed-precision mismatch {err_mixed}"
    assert err_f32 < 1e-1, f"deviation from f32 reference too large {err_f32}"

    print("KERNEL_OK")
</pallas_src>

<mosaic_0001>
module attributes {stable_mosaic.version = 11 : i64} {
  func.func @_fc_init_kernel(%arg0: i32, %arg1: memref<128x128xf32, #tpu.memory_space<vmem>>, %arg2: memref<128x128xbf16, #tpu.memory_space<vmem>>, %arg3: memref<1x128xf32, #tpu.memory_space<vmem>>, %arg4: memref<128x128xbf16, #tpu.memory_space<vmem>>) attributes {dimension_semantics = [#tpu.dimension_semantics<parallel>], iteration_bounds = array<i64: 1>, scalar_prefetch = 0 : i64, scratch_operands = 0 : i64, tpu.core_type = #tpu.core_type<tc>, window_params = [{transform_indices = @transform_0, window_bounds = array<i64: 128, 128>}, {pipeline_mode = #tpu.pipeline_mode<synchronous>, transform_indices = @transform_1, window_bounds = array<i64: 128, 128>}, {pipeline_mode = #tpu.pipeline_mode<synchronous>, transform_indices = @transform_2, window_bounds = array<i64: 1, 128>}, {transform_indices = @transform_3, window_bounds = array<i64: 128, 128>}]} {
    %c0 = arith.constant 0 : index
    %c0_0 = arith.constant 0 : index
    %0 = vector.load %arg1[%c0, %c0_0] : memref<128x128xf32, #tpu.memory_space<vmem>>, vector<128x128xf32>
    %1 = arith.truncf %0 : vector<128x128xf32> to vector<128x128xbf16>
    %c0_1 = arith.constant 0 : index
    %c0_2 = arith.constant 0 : index
    %2 = vector.load %arg2[%c0_1, %c0_2] : memref<128x128xbf16, #tpu.memory_space<vmem>>, vector<128x128xbf16>
    %cst = arith.constant dense<0.000000e+00> : vector<128x128xf32>
    %3 = tpu.matmul %1, %2, %cst {dimension_numbers = #tpu.dot_dimension_numbers<[1], [0], [0], [1], [0, 0, 1, 1], [], []>} : vector<128x128xbf16>, vector<128x128xbf16>, vector<128x128xf32> -> vector<128x128xf32>
    %c0_3 = arith.constant 0 : index
    %c0_4 = arith.constant 0 : index
    %4 = vector.load %arg3[%c0_3, %c0_4] : memref<1x128xf32, #tpu.memory_space<vmem>>, vector<1x128xf32>
    %5 = vector.broadcast %4 : vector<1x128xf32> to vector<128x128xf32>
    %6 = arith.addf %3, %5 : vector<128x128xf32>
    %cst_5 = arith.constant 0.000000e+00 : f32
    %7 = vector.broadcast %cst_5 : f32 to vector<128x128xf32>
    %8 = arith.maximumf %6, %7 : vector<128x128xf32>
    %9 = arith.truncf %8 : vector<128x128xf32> to vector<128x128xbf16>
    %c0_6 = arith.constant 0 : index
    %c0_7 = arith.constant 0 : index
    %10 = vector.load %arg4[%c0_6, %c0_7] : memref<128x128xbf16, #tpu.memory_space<vmem>>, vector<128x128xbf16>
    tpu.vector_store %arg4[%c0_6, %c0_7], %9 {strides = array<i32>} : memref<128x128xbf16, #tpu.memory_space<vmem>>, vector<128x128xbf16>,
    return
  }
  func.func @transform_0(%arg0: i32) -> (i32, i32) {
    %c0_i32 = arith.constant 0 : i32
    %c0_i32_0 = arith.constant 0 : i32
    return %arg0, %c0_i32 : i32, i32
  }
  func.func @transform_1(%arg0: i32) -> (i32, i32) {
    %c0_i32 = arith.constant 0 : i32
    %c0_i32_0 = arith.constant 0 : i32
    %c0_i32_1 = arith.constant 0 : i32
    return %c0_i32, %c0_i32_0 : i32, i32
  }
  func.func @transform_2(%arg0: i32) -> (i32, i32) {
    %c0_i32 = arith.constant 0 : i32
    %c0_i32_0 = arith.constant 0 : i32
    %c0_i32_1 = arith.constant 0 : i32
    return %c0_i32, %c0_i32_0 : i32, i32
  }
  func.func @transform_3(%arg0: i32) -> (i32, i32) {
    %c0_i32 = arith.constant 0 : i32
    %c0_i32_0 = arith.constant 0 : i32
    return %arg0, %c0_i32 : i32, i32
  }
}

</mosaic_0001>

<llo_original>
// kernel: tpu_custom_call.1
$region0: #{tpu_custom_call.1}
  #allocation0 [shape = 'u32[]', space=smem, size = 0x4, offset = 0x4, fixed_abs, tag = 'smem constant byte address 0x4 - core index']
  #allocation1 [shape = 'u32[144,128]{1,0:T(1,128)}', space=vmem, size = 0x12000, scoped, tag = 'internal scratch']
  %s0 = inlined_call_operand.hbm [shape: f32[128,128], index: 0, kind: input, shape index: {}]
  %s1 = inlined_call_operand.hbm [shape: bf16[128,128], index: 1, kind: input, shape index: {}]
  %s2 = inlined_call_operand.vmem [shape: f32[1,128], index: 2, kind: input, shape index: {}]
  %s3 = inlined_call_operand.hbm [shape: bf16[128,128], index: 3, kind: output, shape index: {}]
  %s4 = sld [smem:[#allocation0]]
  $region30: #{tpu_custom_call.1} parent=0
    _
  %s6 = ssub.s32 1, %s4
  %s7 = scalar_select 0, %s6, %s4
  $region1: #{tpu_custom_call.1} parent=0
    #allocation2 [shape = 'u8[65536]{0}', space=vmem, size = 0x10000, scoped, tag = 'input window, operand 0, single buffered']
    #allocation3 [shape = 's32[1]{0}', space=sflag, size = 0x4, scoped, tag = 'scoped memory for tpu_custom_call.1']
    #allocation4 [shape = 's32[1]{0}', space=sflag, size = 0x4, scoped, tag = 'scoped memory for tpu_custom_call.1']
    #allocation5 [shape = 'u8[32768]{0}', space=vmem, size = 0x8000, scoped, tag = 'input window, operand 1, single buffered']
    #allocation6 [shape = 's32[1]{0}', space=sflag, size = 0x4, scoped, tag = 'scoped memory for tpu_custom_call.1']
    #allocation7 [shape = 'u8[32768]{0}', space=vmem, size = 0x8000, scoped, tag = 'output window, operand 0, single buffered']
    %8 = vsyncpa [#allocation3], 0
    %9 = vsyncpa [#allocation6], 0
    %10 = vsyncpa [#allocation4], 0
    // Predicated region
    $region2: #{tpu_custom_call.1} parent=1 // pred_check
      _
    $region3: #{tpu_custom_call.1} parent=1 // pred_check_branch
      %12 = sbr.rel (0) target = $region5
    $region4: #{tpu_custom_call.1} parent=1 // pred_region
      %s14 = ssub.s32 2048, 2048
      %15 = vsyncadd [#allocation3], %s14
      %s16 = sshll.u32 [#allocation2], 4
      %s17 = int_to_ptr.vmem [resolvable:$true] %s16
      %22 = dma.hbm_to_vmem [thread:$0]  %s0, 2048, %s17, [#allocation3], 128, 128, 8
    $region5: #{tpu_custom_call.1} parent=1 // pred_fallthru
      _
    // Predicated region
    $region6: #{tpu_custom_call.1} parent=1 // pred_check
      _
    $region7: #{tpu_custom_call.1} parent=1 // pred_check_branch
      %24 = sbr.rel (0) target = $region9
    $region8: #{tpu_custom_call.1} parent=1 // pred_region
      %s26 = ssub.s32 1024, 1024
      %27 = vsyncadd [#allocation6], %s26
      %s28 = sshll.u32 [#allocation5], 4
      %s29 = int_to_ptr.vmem [resolvable:$true] %s28
      %34 = dma.hbm_to_vmem [thread:$0]  %s1, 1024, %s29, [#allocation6], 64, 64, 4
    $region9: #{tpu_custom_call.1} parent=1 // pred_fallthru
      _
    // Predicated region
    $region10: #{tpu_custom_call.1} parent=1 // pred_check
      _
    $region11: #{tpu_custom_call.1} parent=1 // pred_check_branch
      %36 = sbr.rel (0) target = $region13
    $region12: #{tpu_custom_call.1} parent=1 // pred_region
      _
    $region13: #{tpu_custom_call.1} parent=1 // pred_fallthru
      _
    // Predicated region
    $region14: #{tpu_custom_call.1} parent=1 // pred_check
      _
    $region15: #{tpu_custom_call.1} parent=1 // pred_check_branch
      %38 = sbr.rel (0) target = $region17
    $region16: #{tpu_custom_call.1} parent=1 // pred_region
      %39 = dma.done [#allocation3], 2048
    $region17: #{tpu_custom_call.1} parent=1 // pred_fallthru
      _
    // Predicated region
    $region18: #{tpu_custom_call.1} parent=1 // pred_check
      _
    $region19: #{tpu_custom_call.1} parent=1 // pred_check_branch
      %41 = sbr.rel (0) target = $region21
    $region20: #{tpu_custom_call.1} parent=1 // pred_region
      %42 = dma.done [#allocation6], 1024
    $region21: #{tpu_custom_call.1} parent=1 // pred_fallthru
      _
    %v44 = vld [vmem:[#allocation2] sm:$0xff]
    %v45 = vld [vmem:[#allocation2 + $0x8] sm:$0xff]
    %v46 = vld [vmem:[#allocation2 + $0x10] sm:$0xff]
    %v47 = vld [vmem:[#allocation2 + $0x18] sm:$0xff]
    %v48 = vld [vmem:[#allocation2 + $0x20] sm:$0xff]
    %v49 = vld [vmem:[#allocation2 + $0x28] sm:$0xff]
    %v50 = vld [vmem:[#allocation2 + $0x30] sm:$0xff]
    %v51 = vld [vmem:[#allocation2 + $0x38] sm:$0xff]
    %v52 = vld [vmem:[#allocation2 + $0x40] sm:$0xff]
    %v53 = vld [vmem:[#allocation2 + $0x48] sm:$0xff]
    %v54 = vld [vmem:[#allocation2 + $0x50] sm:$0xff]
    %v55 = vld [vmem:[#allocation2 + $0x58] sm:$0xff]
    %v56 = vld [vmem:[#allocation2 + $0x60] sm:$0xff]
    %v57 = vld [vmem:[#allocation2 + $0x68] sm:$0xff]
    %v58 = vld [vmem:[#allocation2 + $0x70] sm:$0xff]
    %v59 = vld [vmem:[#allocation2 + $0x78] sm:$0xff]
    %v60 = vpack.c.bf16 %v45, %v44
    %v61 = vpack.c.bf16 %v47, %v46
    %v62 = vpack.c.bf16 %v49, %v48
    %v63 = vpack.c.bf16 %v51, %v50
    %v64 = vpack.c.bf16 %v53, %v52
    %v65 = vpack.c.bf16 %v55, %v54
    %v66 = vpack.c.bf16 %v57, %v56
    %v67 = vpack.c.bf16 %v59, %v58
    %v68 = vld [vmem:[#allocation5] sm:$0xf]
    %v69 = vld [vmem:[#allocation5 + $0x4] sm:$0xf]
    %v70 = vld [vmem:[#allocation5 + $0x8] sm:$0xf]
    %v71 = vld [vmem:[#allocation5 + $0xc] sm:$0xf]
    %v72 = vld [vmem:[#allocation5 + $0x10] sm:$0xf]
    %v73 = vld [vmem:[#allocation5 + $0x14] sm:$0xf]
    %v74 = vld [vmem:[#allocation5 + $0x18] sm:$0xf]
    %v75 = vld [vmem:[#allocation5 + $0x1c] sm:$0xf]
    %v76 = vld [vmem:[#allocation5 + $0x20] sm:$0xf]
    %v77 = vld [vmem:[#allocation5 + $0x24] sm:$0xf]
    %v78 = vld [vmem:[#allocation5 + $0x28] sm:$0xf]
    %v79 = vld [vmem:[#allocation5 + $0x2c] sm:$0xf]
    %v80 = vld [vmem:[#allocation5 + $0x30] sm:$0xf]
    %v81 = vld [vmem:[#allocation5 + $0x34] sm:$0xf]
    %v82 = vld [vmem:[#allocation5 + $0x38] sm:$0xf]
    %v83 = vld [vmem:[#allocation5 + $0x3c] sm:$0xf]
    %v84 = vld [vmem:[%s2] sm:$0x1]
    %v86 = vlaneseq
    %v87 = vshrl.u32 %v86, 7
    %v88 = vsub.s32 0, %v87
    %v89 = vrot.slane %v84, %v88
    %v107 = vunpack.c.l.b16 %v68
    %v108 = vunpack.c.l.b16 %v69
    %v109 = vunpack.c.l.b16 %v70
    %v110 = vunpack.c.l.b16 %v71
    %v111 = vunpack.c.l.b16 %v72
    %v112 = vunpack.c.l.b16 %v73
    %v113 = vunpack.c.l.b16 %v74
    %v114 = vunpack.c.l.b16 %v75
    %v115 = vunpack.c.l.b16 %v76
    %v116 = vunpack.c.l.b16 %v77
    %v117 = vunpack.c.l.b16 %v78
    %v118 = vunpack.c.l.b16 %v79
    %v119 = vunpack.c.l.b16 %v80
    %v120 = vunpack.c.l.b16 %v81
    %v121 = vunpack.c.l.b16 %v82
    %v122 = vunpack.c.l.b16 %v83
    %v123 = vpack.c.b16 %v108, %v107
    %v124 = vpack.c.b16 %v110, %v109
    %v125 = vpack.c.b16 %v112, %v111
    %v126 = vpack.c.b16 %v114, %v113
    %v127 = vpack.c.b16 %v116, %v115
    %v128 = vpack.c.b16 %v118, %v117
    %v129 = vpack.c.b16 %v120, %v119
    %v130 = vpack.c.b16 %v122, %v121
    %139 = vmatprep.subr.bf16.mxu0 0
    %140 = vmatpush1.bf16.msra.mxu0 %v123
    %141 = vmatprep.subr.bf16.mxu0 0
    %142 = vmatpush1.bf16.msra.mxu0 %v124
    %143 = vmatprep.subr.bf16.mxu0 0
    %144 = vmatpush1.bf16.msra.mxu0 %v125
    %145 = vmatprep.subr.bf16.mxu0 0
    %146 = vmatpush1.bf16.msra.mxu0 %v126
    %147 = vmatprep.subr.bf16.mxu0 0
    %148 = vmatpush1.bf16.msra.mxu0 %v127
    %149 = vmatprep.subr.bf16.mxu0 0
    %150 = vmatpush1.bf16.msra.mxu0 %v128
    %151 = vmatprep.subr.bf16.mxu0 0
    %152 = vmatpush1.bf16.msra.mxu0 %v129
    %153 = vmatprep.subr.bf16.mxu0 0
    %154 = vmatpush1.bf16.msra.mxu0 %v130
    %155 = vmatprep.subr.bf16.mxu0 0
    %156 = vmatpush1.bf16.msra.mxu0 0
    %157 = vmatprep.subr.bf16.mxu0 0
    %158 = vmatpush1.bf16.msra.mxu0 0
    %159 = vmatprep.subr.bf16.mxu0 0
    %160 = vmatpush1.bf16.msra.mxu0 0
    %161 = vmatprep.subr.bf16.mxu0 0
    %162 = vmatpush1.bf16.msra.mxu0 0
    %163 = vmatprep.subr.bf16.mxu0 0
    %164 = vmatpush1.bf16.msra.mxu0 0
    %165 = vmatprep.subr.bf16.mxu0 0
    %166 = vmatpush1.bf16.msra.mxu0 0
    %167 = vmatprep.subr.bf16.mxu0 0
    %168 = vmatpush1.bf16.msra.mxu0 0
    %169 = vmatprep.subr.bf16.mxu0 0
    %170 = vmatpush1.bf16.msra.mxu0 0
    %171 = vmatprep.mubr.bf16.mxu0 0
    %172 = vmatmul.mubr.bf16.gmra.mrb[0].mxu0 %v60
    %v173 = vpop.f32.mrb[0].mxu0
    %v174 = vadd.f32 %v89, %v173
    %v175 = vpop.f32.mrb[0].mxu0
    %v176 = vpop.f32.mrb[0].mxu0
    %v177 = vadd.f32 %v89, %v176
    %v178 = vpop.f32.mrb[0].mxu0
    %179 = vmatprep.mubr.bf16.mxu0 0
    %180 = vmatmul.mubr.bf16.gmra.mrb[0].mxu0 %v61
    %v181 = vpop.f32.mrb[0].mxu0
    %v182 = vadd.f32 %v89, %v181
    %v183 = vpop.f32.mrb[0].mxu0
    %v184 = vpop.f32.mrb[0].mxu0
    %v185 = vadd.f32 %v89, %v184
    %v186 = vpop.f32.mrb[0].mxu0
    %187 = vmatprep.mubr.bf16.mxu0 0
    %188 = vmatmul.mubr.bf16.gmra.mrb[0].mxu0 %v62
    %v189 = vpop.f32.mrb[0].mxu0
    %v190 = vadd.f32 %v89, %v189
    %v191 = vpop.f32.mrb[0].mxu0
    %v192 = vpop.f32.mrb[0].mxu0
    %v193 = vadd.f32 %v89, %v192
    %v194 = vpop.f32.mrb[0].mxu0
    %195 = vmatprep.mubr.bf16.mxu0 0
    %196 = vmatmul.mubr.bf16.gmra.mrb[0].mxu0 %v63
    %v197 = vpop.f32.mrb[0].mxu0
    %v198 = vadd.f32 %v89, %v197
    %v199 = vpop.f32.mrb[0].mxu0
    %v200 = vpop.f32.mrb[0].mxu0
    %v201 = vadd.f32 %v89, %v200
    %v202 = vpop.f32.mrb[0].mxu0
    %203 = vmatprep.mubr.bf16.mxu0 0
    %204 = vmatmul.mubr.bf16.gmra.mrb[0].mxu0 %v64
    %v205 = vpop.f32.mrb[0].mxu0
    %v206 = vadd.f32 %v89, %v205
    %v207 = vpop.f32.mrb[0].mxu0
    %v208 = vpop.f32.mrb[0].mxu0
    %v209 = vadd.f32 %v89, %v208
    %v210 = vpop.f32.mrb[0].mxu0
    %211 = vmatprep.mubr.bf16.mxu0 0
    %212 = vmatmul.mubr.bf16.gmra.mrb[0].mxu0 %v65
    %v213 = vpop.f32.mrb[0].mxu0
    %v214 = vadd.f32 %v89, %v213
    %v215 = vpop.f32.mrb[0].mxu0
    %v216 = vpop.f32.mrb[0].mxu0
    %v217 = vadd.f32 %v89, %v216
    %v218 = vpop.f32.mrb[0].mxu0
    %219 = vmatprep.mubr.bf16.mxu0 0
    %220 = vmatmul.mubr.bf16.gmra.mrb[0].mxu0 %v66
    %v221 = vpop.f32.mrb[0].mxu0
    %v222 = vadd.f32 %v89, %v221
    %v223 = vpop.f32.mrb[0].mxu0
    %v224 = vpop.f32.mrb[0].mxu0
    %v225 = vadd.f32 %v89, %v224
    %v226 = vpop.f32.mrb[0].mxu0
    %227 = vmatprep.mubr.bf16.mxu0 0
    %228 = vmatmul.mubr.bf16.gmra.mrb[0].mxu0 %v67
    %v229 = vpop.f32.mrb[0].mxu0
    %v230 = vadd.f32 %v89, %v229
    %v231 = vpop.f32.mrb[0].mxu0
    %v232 = vpop.f32.mrb[0].mxu0
    %v233 = vadd.f32 %v89, %v232
    %v234 = vpop.f32.mrb[0].mxu0
    %235 = vdwg.mxu0
    %v236 = vmax.f32 %v174, 0.0
    %v237 = vmax.f32 %v177, 0.0
    %v238 = vmax.f32 %v182, 0.0
    %v239 = vmax.f32 %v185, 0.0
    %v240 = vmax.f32 %v190, 0.0
    %v241 = vmax.f32 %v193, 0.0
    %v242 = vmax.f32 %v198, 0.0
    %v243 = vmax.f32 %v201, 0.0
    %v244 = vmax.f32 %v206, 0.0
    %v245 = vmax.f32 %v209, 0.0
    %v246 = vmax.f32 %v214, 0.0
    %v247 = vmax.f32 %v217, 0.0
    %v248 = vmax.f32 %v222, 0.0
    %v249 = vmax.f32 %v225, 0.0
    %v250 = vmax.f32 %v230, 0.0
    %v251 = vmax.f32 %v233, 0.0
    %v252 = vpack.c.bf16 %v237, %v236
    %v253 = vpack.c.bf16 %v239, %v238
    %v254 = vpack.c.bf16 %v241, %v240
    %v255 = vpack.c.bf16 %v243, %v242
    %v256 = vpack.c.bf16 %v245, %v244
    %v257 = vpack.c.bf16 %v247, %v246
    %v258 = vpack.c.bf16 %v249, %v248
    %v259 = vpack.c.bf16 %v251, %v250
    %v268 = vunpack.c.l.b16 %v252
    %v269 = vunpack.c.h.b16 %v252
    %v270 = vunpack.c.l.b16 %v253
    %v271 = vunpack.c.h.b16 %v253
    %v272 = vunpack.c.l.b16 %v254
    %v273 = vunpack.c.h.b16 %v254
    %v274 = vunpack.c.l.b16 %v255
    %v275 = vunpack.c.h.b16 %v255
    %v276 = vunpack.c.l.b16 %v256
    %v277 = vunpack.c.h.b16 %v256
    %v278 = vunpack.c.l.b16 %v257
    %v279 = vunpack.c.h.b16 %v257
    %v280 = vunpack.c.l.b16 %v258
    %v281 = vunpack.c.h.b16 %v258
    %v282 = vunpack.c.l.b16 %v259
    %v283 = vunpack.c.h.b16 %v259
    %v284 = vpack.c.b16 %v268, %v268
    %v285 = vpack.c.b16 %v269, %v269
    %v286 = vpack.c.b16 %v270, %v270
    %v287 = vpack.c.b16 %v271, %v271
    %v288 = vpack.c.b16 %v272, %v272
    %v289 = vpack.c.b16 %v273, %v273
    %v290 = vpack.c.b16 %v274, %v274
    %v291 = vpack.c.b16 %v275, %v275
    %v292 = vpack.c.b16 %v276, %v276
    %v293 = vpack.c.b16 %v277, %v277
    %v294 = vpack.c.b16 %v278, %v278
    %v295 = vpack.c.b16 %v279, %v279
    %v296 = vpack.c.b16 %v280, %v280
    %v297 = vpack.c.b16 %v281, %v281
    %v298 = vpack.c.b16 %v282, %v282
    %v299 = vpack.c.b16 %v283, %v283
    %316 = vst [vmem:[#allocation7] sm:$0xf] %v284
    %317 = vst [vmem:[#allocation7 + $0x4] sm:$0xf] %v285
    %318 = vst [vmem:[#allocation7 + $0x8] sm:$0xf] %v286
    %319 = vst [vmem:[#allocation7 + $0xc] sm:$0xf] %v287
    %320 = vst [vmem:[#allocation7 + $0x10] sm:$0xf] %v288
    %321 = vst [vmem:[#allocation7 + $0x14] sm:$0xf] %v289
    %322 = vst [vmem:[#allocation7 + $0x18] sm:$0xf] %v290
    %323 = vst [vmem:[#allocation7 + $0x1c] sm:$0xf] %v291
    %324 = vst [vmem:[#allocation7 + $0x20] sm:$0xf] %v292
    %325 = vst [vmem:[#allocation7 + $0x24] sm:$0xf] %v293
    %326 = vst [vmem:[#allocation7 + $0x28] sm:$0xf] %v294
    %327 = vst [vmem:[#allocation7 + $0x2c] sm:$0xf] %v295
    %328 = vst [vmem:[#allocation7 + $0x30] sm:$0xf] %v296
    %329 = vst [vmem:[#allocation7 + $0x34] sm:$0xf] %v297
    %330 = vst [vmem:[#allocation7 + $0x38] sm:$0xf] %v298
    %331 = vst [vmem:[#allocation7 + $0x3c] sm:$0xf] %v299
    // Predicated region
    $region22: #{tpu_custom_call.1} parent=1 // pred_check
      _
    $region23: #{tpu_custom_call.1} parent=1 // pred_check_branch
      %333 = sbr.rel (0) target = $region25
    $region24: #{tpu_custom_call.1} parent=1 // pred_region
      %s335 = ssub.s32 1024, 1024
      %336 = vsyncadd [#allocation4], %s335
      %s337 = sshll.u32 [#allocation7], 4
      %s338 = int_to_ptr.vmem [resolvable:$true] %s337
      %343 = dma.vmem_to_hbm [thread:$0]  %s338, 1024, %s3, [#allocation4], 64, 64, 4
    $region25: #{tpu_custom_call.1} parent=1 // pred_fallthru
      _
    // Predicated region
    $region26: #{tpu_custom_call.1} parent=1 // pred_check
      _
    $region27: #{tpu_custom_call.1} parent=1 // pred_check_branch
      %345 = sbr.rel (0) target = $region29
    $region28: #{tpu_custom_call.1} parent=1 // pred_region
      %346 = dma.done [#allocation4], 1024
    $region29: #{tpu_custom_call.1} parent=1 // pred_fallthru
      _
    %347 = vsyncpa [#allocation3], 1
    %348 = vsyncpa [#allocation6], 1
    %349 = vsyncpa [#allocation4], 1

</llo_original>
